<compile_context>
chip_gen: v6e
topology: v6e:2x2x1
jax: 0.10.0
libtpu: 0.0.40
codegen_flags: <defaults>
</compile_context>

<pallas_src>
import functools
import math

import jax
import jax.numpy as jnp
from jax.experimental import pallas as pl
from jax.experimental.pallas import tpu as pltpu


def _round_up(n: int, m: int) -> int:
    return ((n + m - 1) // m) * m


def _linear_kernel(x_ref, w_ref, b_ref, o_ref):
    """One (tm, in_f) row tile x one (in_f, tn) weight tile on the MXU."""
    acc = jnp.dot(x_ref[...], w_ref[...], preferred_element_type=jnp.float32)
    # Bias add in f32 before the final downcast (b_ref is (1, tn), one
    # broadcast per tile - no per-iteration broadcast materialization).
    o_ref[...] = (acc + b_ref[...].astype(jnp.float32)).astype(o_ref.dtype)


@functools.partial(
    jax.jit,
    static_argnames=("block_tokens", "block_out", "use_bf16",
                     "min_rows_for_pallas"))
def pallas_linear(x, w, b, *, block_tokens=512, block_out=None,
                  use_bf16=True, min_rows_for_pallas=128):
    """y = x @ w + b with row (and optionally out-feature) tiling.

    x: (..., in_f) -> (..., out_f).  block_tokens should be a multiple of 256
    (full MXU LHS pass on v6e/v7x; 128 suffices on v5e).
    """
    in_features = x.shape[-1]
    out_features = w.shape[-1]
    lead = x.shape[:-1]
    n_tokens = math.prod(lead) if lead else 1          # static Python int
    out_dtype = x.dtype

    # Tiny or empty inputs: a 1-step Pallas pipeline (plus its fixed overhead)
    # loses to XLA's fused GEMM, and this also guards the zero-trip grid case.
    if n_tokens < max(min_rows_for_pallas, 1):
        y = jnp.dot(x, w, preferred_element_type=jnp.float32) + b
        return y.astype(out_dtype)

    compute_dtype = jnp.bfloat16 if use_bf16 else x.dtype
    x2 = x.reshape(n_tokens, in_features).astype(compute_dtype)
    w2 = w.astype(compute_dtype)
    b2 = b.reshape(1, out_features).astype(jnp.float32)

    itemsize = jnp.dtype(compute_dtype).itemsize
    out_itemsize = jnp.dtype(out_dtype).itemsize

    # --- Row (token) tile: no padding; the last block is partial and masked.
    if n_tokens >= block_tokens:
        tm = block_tokens
    else:
        tm = min(_round_up(n_tokens, 8), block_tokens)
    num_token_tiles = (n_tokens + tm - 1) // tm

    # --- Out-feature tile: keep W fully resident only while it is small;
    #     otherwise tile N so VMEM scales as in_f * tn (v7x: 64 MiB/core).
    if block_out is None:
        w_resident_bytes = in_features * out_features * itemsize
        block_out = out_features if w_resident_bytes <= (16 << 20) else 512
    if out_features > 128:
        tn = min(_round_up(block_out, 128), out_features)
    else:
        tn = out_features
    num_out_tiles = (out_features + tn - 1) // tn
    w_constant = num_out_tiles == 1

    # Constant (never re-fetched) weight/bias blocks only need one buffer.
    if w_constant:
        w_spec = pl.BlockSpec((in_features, tn), lambda j, i: (0, j),
                              pipeline_mode=pl.Buffered(1))
        b_spec = pl.BlockSpec((1, tn), lambda j, i: (0, j),
                              pipeline_mode=pl.Buffered(1))
    else:
        w_spec = pl.BlockSpec((in_features, tn), lambda j, i: (0, j))
        b_spec = pl.BlockSpec((1, tn), lambda j, i: (0, j))
    x_spec = pl.BlockSpec((tm, in_features), lambda j, i: (i, 0))
    o_spec = pl.BlockSpec((tm, tn), lambda j, i: (i, j))

    # --- Accurate VMEM budget (no double counting), capped below v7x capacity.
    w_bufs = 1 if w_constant else 2
    needed = (2 * tm * in_features * itemsize          # x tile, double-buffered
              + 2 * tm * tn * out_itemsize             # out tile, double-buffered
              + w_bufs * in_features * tn * itemsize   # weight block(s)
              + w_bufs * tn * 4)                       # bias block(s)
    vmem_limit = int(min(max(needed + (2 << 20), 4 << 20), 48 << 20))

    cost = pl.CostEstimate(
        flops=2 * n_tokens * in_features * out_features,
        transcendentals=0,
        bytes_accessed=int(num_out_tiles * n_tokens * in_features * itemsize
                           + in_features * out_features * itemsize
                           + out_features * 4
                           + n_tokens * out_features * out_itemsize),
    )

    out = pl.pallas_call(
        _linear_kernel,
        out_shape=jax.ShapeDtypeStruct((n_tokens, out_features), out_dtype),
        grid_spec=pltpu.PrefetchScalarGridSpec(
            num_scalar_prefetch=0,
            # Token axis innermost so the weight block is only re-fetched when
            # the out-feature tile changes.
            grid=(num_out_tiles, num_token_tiles),
            in_specs=[x_spec, w_spec, b_spec],
            out_specs=o_spec,
        ),
        compiler_params=pltpu.CompilerParams(
            dimension_semantics=("parallel", "parallel"),
            vmem_limit_bytes=vmem_limit,
        ),
        cost_estimate=cost,
    )(x2, w2, b2)

    return out.reshape(*lead, out_features)


def init_up_dim(key, mlp_head_dim, pooling_dim):
    """Matches layer_init(self.up_dim, xavier=True): xavier-uniform W, zero bias."""
    limit = math.sqrt(6.0 / (mlp_head_dim + pooling_dim))
    w = jax.random.uniform(key, (mlp_head_dim, pooling_dim), jnp.float32,
                           -limit, limit)
    b = jnp.zeros((pooling_dim,), jnp.float32)
    return w, b


def _split_by(x, sizes):
    out, off = [], 0
    for s in sizes:
        out.append(x[off:off + s])
        off += s
    return out


def imp_predictor_forward(num_objs, num_rels, obj_dists, rel_dists,
                          union_features, up_dim_params=None, *,
                          block_tokens=512):
    """Mirrors IMPPredictor.forward (inference).

    obj_dists / rel_dists stand in for the IMPContext outputs (see TODO above).
    union_features is additionally returned so the up_dim kernel output is
    observable (in the reference it feeds IMPContext).
    """
    if up_dim_params is not None:                 # self.union_single_not_match
        w, b = up_dim_params
        union_features = pallas_linear(union_features, w, b,
                                       block_tokens=block_tokens)
    # TODO(synk): obj_dists, rel_dists = IMPContext(roi_features, proposals,
    #             union_features, rel_pair_idxs) is not translated (no spec).
    assert len(num_rels) == len(num_objs)
    # self.use_bias == False in the reference -> FrequencyBias branch skipped.
    obj_dists = _split_by(obj_dists, num_objs)
    rel_dists = _split_by(rel_dists, num_rels)
    add_losses = {}
    return obj_dists, rel_dists, add_losses, union_features


if __name__ == "__main__":
    key = jax.random.PRNGKey(0)
    k_u, k_w, k_o, k_r = jax.random.split(key, 4)

    # Small demo shapes; feature dims are multiples of 128 (lane-dense output).
    mlp_head_dim = 256      # MODEL.ROI_BOX_HEAD.MLP_HEAD_DIM
    pooling_dim = 512       # MODEL.ROI_RELATION_HEAD.CONTEXT_POOLING_DIM (!= head dim)
    num_obj_cls = 32
    num_rel_cls = 16
    num_objs = [40, 40]     # objects per image
    num_rels = [150, 150]   # relation pairs per image
    n_obj = sum(num_objs)
    n_rel = sum(num_rels)   # 300 rows -> 3x128-row tiles, ragged 44-row tail

    union_features = jax.random.normal(k_u, (n_rel, mlp_head_dim), jnp.float32)
    up_w, up_b = init_up_dim(k_w, mlp_head_dim, pooling_dim)

    # Stand-ins for the (untranslated) IMPContext outputs.
    obj_dists_all = jax.random.normal(k_o, (n_obj, num_obj_cls), jnp.float32)
    rel_dists_all = jax.random.normal(k_r, (n_rel, num_rel_cls), jnp.float32)

    # References: same numerics as the kernel (bf16 operands, f32 accumulate)
    # and the full-f32 linear layer (loose tolerance, sanity only).
    ref_bf16 = jnp.dot(union_features.astype(jnp.bfloat16),
                       up_w.astype(jnp.bfloat16),
                       preferred_element_type=jnp.float32) + up_b
    ref_f32 = union_features @ up_w + up_b

    # 1) Kernel path, resident single-buffered weight, partial last row block.
    y1 = pallas_linear(union_features, up_w, up_b, block_tokens=128,
                       min_rows_for_pallas=1)
    y1 = jax.block_until_ready(y1)
    assert y1.shape == (n_rel, pooling_dim) and y1.dtype == jnp.float32
    assert jnp.allclose(y1, ref_bf16, atol=2e-3, rtol=2e-3), float(
        jnp.max(jnp.abs(y1 - ref_bf16)))
    assert jnp.allclose(y1, ref_f32, atol=1e-1, rtol=1e-1)

    # 2) Kernel path with out-feature tiling (2-D grid, non-resident weight).
    y2 = pallas_linear(union_features, up_w, up_b, block_tokens=128,
                       block_out=128, min_rows_for_pallas=1)
    y2 = jax.block_until_ready(y2)
    assert jnp.allclose(y2, ref_bf16, atol=2e-3, rtol=2e-3)

    # 3) Small-input fallback (XLA fused GEMM) and empty-input guard.
    y_small = pallas_linear(union_features[:13], up_w, up_b)
    y_small = jax.block_until_ready(y_small)
    assert jnp.allclose(y_small, ref_f32[:13], atol=1e-4, rtol=1e-4)
    y_empty = pallas_linear(jnp.zeros((0, mlp_head_dim), jnp.float32), up_w, up_b)
    assert jax.block_until_ready(y_empty).shape == (0, pooling_dim)

    # 4) Full forward glue (up_dim kernel + per-image splitting).
    obj_dists, rel_dists, add_losses, union_out = imp_predictor_forward(
        num_objs, num_rels, obj_dists_all, rel_dists_all, union_features,
        up_dim_params=(up_w, up_b), block_tokens=128)
    union_out = jax.block_until_ready(union_out)
    assert [int(d.shape[0]) for d in obj_dists] == num_objs
    assert [int(d.shape[0]) for d in rel_dists] == num_rels
    assert union_out.shape == (n_rel, pooling_dim)
    assert jnp.allclose(union_out, ref_bf16, atol=2e-3, rtol=2e-3)
    assert add_losses == {}

    print("KERNEL_OK")
</pallas_src>

<mosaic_0001>
module attributes {stable_mosaic.version = 11 : i64} {
  func.func @_linear_kernel(%arg0: i32, %arg1: i32, %arg2: memref<128x256xbf16, #tpu.memory_space<vmem>>, %arg3: memref<256x512xbf16, #tpu.memory_space<vmem>>, %arg4: memref<1x512xf32, #tpu.memory_space<vmem>>, %arg5: memref<128x512xf32, #tpu.memory_space<vmem>>) attributes {dimension_semantics = [#tpu.dimension_semantics<parallel>, #tpu.dimension_semantics<parallel>], iteration_bounds = array<i64: 1, 3>, scalar_prefetch = 0 : i64, scratch_operands = 0 : i64, tpu.core_type = #tpu.core_type<tc>, window_params = [{transform_indices = @transform_0, window_bounds = array<i64: 128, 256>}, {pipeline_mode = #tpu.pipeline_mode<synchronous>, transform_indices = @transform_1, window_bounds = array<i64: 256, 512>}, {pipeline_mode = #tpu.pipeline_mode<synchronous>, transform_indices = @transform_2, window_bounds = array<i64: 1, 512>}, {transform_indices = @transform_3, window_bounds = array<i64: 128, 512>}]} {
    %c0 = arith.constant 0 : index
    %c0_0 = arith.constant 0 : index
    %0 = vector.load %arg2[%c0, %c0_0] : memref<128x256xbf16, #tpu.memory_space<vmem>>, vector<128x256xbf16>
    %c0_1 = arith.constant 0 : index
    %c0_2 = arith.constant 0 : index
    %1 = vector.load %arg3[%c0_1, %c0_2] : memref<256x512xbf16, #tpu.memory_space<vmem>>, vector<256x512xbf16>
    %cst = arith.constant dense<0.000000e+00> : vector<128x512xf32>
    %2 = tpu.matmul %0, %1, %cst {dimension_numbers = #tpu.dot_dimension_numbers<[1], [0], [0], [1], [0, 0, 1, 1], [], []>} : vector<128x256xbf16>, vector<256x512xbf16>, vector<128x512xf32> -> vector<128x512xf32>
    %c0_3 = arith.constant 0 : index
    %c0_4 = arith.constant 0 : index
    %3 = vector.load %arg4[%c0_3, %c0_4] : memref<1x512xf32, #tpu.memory_space<vmem>>, vector<1x512xf32>
    %4 = vector.broadcast %3 : vector<1x512xf32> to vector<128x512xf32>
    %5 = arith.addf %2, %4 : vector<128x512xf32>
    %c0_5 = arith.constant 0 : index
    %c0_6 = arith.constant 0 : index
    %6 = vector.load %arg5[%c0_5, %c0_6] : memref<128x512xf32, #tpu.memory_space<vmem>>, vector<128x512xf32>
    tpu.vector_store %arg5[%c0_5, %c0_6], %5 {strides = array<i32>} : memref<128x512xf32, #tpu.memory_space<vmem>>, vector<128x512xf32>,
    return
  }
  func.func @transform_0(%arg0: i32, %arg1: i32) -> (i32, i32) {
    %c0_i32 = arith.constant 0 : i32
    %c0_i32_0 = arith.constant 0 : i32
    return %arg1, %c0_i32 : i32, i32
  }
  func.func @transform_1(%arg0: i32, %arg1: i32) -> (i32, i32) {
    %c0_i32 = arith.constant 0 : i32
    %c0_i32_0 = arith.constant 0 : i32
    return %c0_i32, %arg0 : i32, i32
  }
  func.func @transform_2(%arg0: i32, %arg1: i32) -> (i32, i32) {
    %c0_i32 = arith.constant 0 : i32
    %c0_i32_0 = arith.constant 0 : i32
    return %c0_i32, %arg0 : i32, i32
  }
  func.func @transform_3(%arg0: i32, %arg1: i32) -> (i32, i32) {
    %c0_i32 = arith.constant 0 : i32
    return %arg1, %arg0 : i32, i32
  }
}

</mosaic_0001>

<llo_original>
// kernel: pallas_linear.1
$region0: #{pallas_linear.1}
  #allocation0 [shape = 'u32[]', space=smem, size = 0x4, offset = 0x4, fixed_abs, tag = 'smem constant byte address 0x4 - core index']
  #allocation1 [shape = 'u32[144,128]{1,0:T(1,128)}', space=vmem, size = 0x12000, scoped, tag = 'internal scratch']
  %s0 = inlined_call_operand.vmem [shape: bf16[300,256], index: 0, kind: input, shape index: {}]
  %s1 = inlined_call_operand.vmem [shape: bf16[256,512], index: 1, kind: input, shape index: {}]
  %s2 = inlined_call_operand.vmem [shape: f32[1,512], index: 2, kind: input, shape index: {}]
  %s3 = inlined_call_operand.hbm [shape: f32[300,512], index: 3, kind: output, shape index: {}]
  %s4 = sld [smem:[#allocation0]]
  $region45: #{pallas_linear.1} parent=0
    _
  %s6 = ssub.s32 1, %s4
  %s7 = scalar_select 0, %s6, %s4
  $region1: #{pallas_linear.1} parent=0
    #allocation2 [shape = 'u8[524288]{0}', space=vmem, size = 0x80000, scoped, tag = 'output window, operand 0']
    #allocation3 [shape = 's32[2]{0}', space=sflag, size = 0x8, scoped, tag = 'scoped memory for pallas_linear.1']
    %8 = vsyncpa [#allocation3], 0
    %s9 = scalar_lea.sflag [#allocation3], 1
    %10 = vsyncpa %s9, 0
    loop: start=0, step=1, limit=5
    $region2: #{pallas_linear.1} parent=1 // loop_pre_header
      _
    $region3: #{pallas_linear.1} parent=1 // loop_header
      %s12 = sphi 0, %s16
      %p13 = scmp.ge.s32.totalorder %s12, 5
      %s19 = sphi 0, %s31
      %s20 = sphi 0, %s27
      %s21 = sphi 0, %s19
      %s22 = sphi 0, %s20
      %s23 = sphi 0, %s21
      %s24 = sphi 0, %s22
      %s34 = sphi 0, %s36
      %s37 = sphi 0, %s34
      %s38 = sphi 0, %s37
      %s54 = sphi 0, %s38
      %s60 = sphi 0, %s62
      %s63 = sphi 0, %s60
      %s64 = sphi 0, %s63
      %s80 = sphi 0, %s64
      %s86 = sphi 0, %s88
      %s89 = sphi 0, %s86
      %s90 = sphi 0, %s89
      %s106 = sphi 0, %s90
      %s114 = sphi 0, %s116
      %s117 = sphi 0, %s114
      %s118 = sphi 0, %s117
      %s134 = sphi 0, %s118
    $region4: #{pallas_linear.1} parent=1 // loop_header_branch
      %15 = sbr.rel (%p13) target = $region8
    $region5: #{pallas_linear.1} parent=1 // loop_body
      %s17 = ssub.s32 %s12, 1
      %s18 = ssub.s32 %s12, 2
      %s25 = sadd.s32 1, %s20
      %p26 = scmp.ge.s32.totalorder %s25, 3
      %s27 = scalar_select %p26, 0, %s25
      %s28 = sadd.s32 1, %s19
      %s29 = scalar_select %p26, %s28, %s19
      %p30 = scmp.ge.s32.totalorder %s29, 1
      %s31 = scalar_select %p30, 0, %s29
      %s32 = ssub.s32 %s20, %s27
      %p33 = scmp.eq.s32.totalorder %s32, 0
      %s35 = sadd.s32 %s34, 1
      %s36 = scalar_select %p33, %s34, %s35
      %p39 = pneg %p33
      %p40 = scmp.eq.s32.totalorder %s12, 2
      %p41 = por %p39, %p40
      %p42 = scmp.ne.s32.totalorder %s34, %s37
      %p43 = scmp.eq.s32.totalorder %s12, 0
      %p44 = por %p42, %p43
      %p45 = scmp.ne.s32.totalorder %s34, %s37
      %p46 = scmp.eq.s32.totalorder %s17, 2
      %p47 = por %p45, %p46
      %p48 = scmp.ne.s32.totalorder %s37, %s38
      %p49 = scmp.eq.s32.totalorder %s17, 0
      %p50 = por %p48, %p49
      %p51 = scmp.ne.s32.totalorder %s37, %s38
      %p52 = scmp.eq.s32.totalorder %s18, 2
      %p53 = por %p51, %p52
      %p55 = scmp.ne.s32.totalorder %s38, %s54
      %p56 = scmp.eq.s32.totalorder %s18, 0
      %p57 = por %p55, %p56
      %s58 = ssub.s32 %s19, %s31
      %p59 = scmp.eq.s32.totalorder %s58, 0
      %s61 = sadd.s32 %s60, 1
      %s62 = scalar_select %p59, %s60, %s61
      %p65 = pneg %p59
      %p66 = scmp.eq.s32.totalorder %s12, 2
      %p67 = por %p65, %p66
      %p68 = scmp.ne.s32.totalorder %s60, %s63
      %p69 = scmp.eq.s32.totalorder %s12, 0
      %p70 = por %p68, %p69
      %p71 = scmp.ne.s32.totalorder %s60, %s63
      %p72 = scmp.eq.s32.totalorder %s17, 2
      %p73 = por %p71, %p72
      %p74 = scmp.ne.s32.totalorder %s63, %s64
      %p75 = scmp.eq.s32.totalorder %s17, 0
      %p76 = por %p74, %p75
      %p77 = scmp.ne.s32.totalorder %s63, %s64
      %p78 = scmp.eq.s32.totalorder %s18, 2
      %p79 = por %p77, %p78
      %p81 = scmp.ne.s32.totalorder %s64, %s80
      %p82 = scmp.eq.s32.totalorder %s18, 0
      %p83 = por %p81, %p82
      %s84 = ssub.s32 %s19, %s31
      %p85 = scmp.eq.s32.totalorder %s84, 0
      %s87 = sadd.s32 %s86, 1
      %s88 = scalar_select %p85, %s86, %s87
      %p91 = pneg %p85
      %p92 = scmp.eq.s32.totalorder %s12, 2
      %p93 = por %p91, %p92
      %p94 = scmp.ne.s32.totalorder %s86, %s89
      %p95 = scmp.eq.s32.totalorder %s12, 0
      %p96 = por %p94, %p95
      %p97 = scmp.ne.s32.totalorder %s86, %s89
      %p98 = scmp.eq.s32.totalorder %s17, 2
      %p99 = por %p97, %p98
      %p100 = scmp.ne.s32.totalorder %s89, %s90
      %p101 = scmp.eq.s32.totalorder %s17, 0
      %p102 = por %p100, %p101
      %p103 = scmp.ne.s32.totalorder %s89, %s90
      %p104 = scmp.eq.s32.totalorder %s18, 2
      %p105 = por %p103, %p104
      %p107 = scmp.ne.s32.totalorder %s90, %s106
      %p108 = scmp.eq.s32.totalorder %s18, 0
      %p109 = por %p107, %p108
      %s110 = ssub.s32 %s20, %s27
      %s111 = ssub.s32 %s19, %s31
      %s112 = sor.u32 %s110, %s111
      %p113 = scmp.eq.s32.totalorder %s112, 0
      %s115 = sadd.s32 %s114, 1
      %s116 = scalar_select %p113, %s114, %s115
      %p119 = pneg %p113
      %p120 = scmp.eq.s32.totalorder %s12, 2
      %p121 = por %p119, %p120
      %p122 = scmp.ne.s32.totalorder %s114, %s117
      %p123 = scmp.eq.s32.totalorder %s12, 0
      %p124 = por %p122, %p123
      %p125 = scmp.ne.s32.totalorder %s114, %s117
      %p126 = scmp.eq.s32.totalorder %s17, 2
      %p127 = por %p125, %p126
      %p128 = scmp.ne.s32.totalorder %s117, %s118
      %p129 = scmp.eq.s32.totalorder %s17, 0
      %p130 = por %p128, %p129
      %p131 = scmp.ne.s32.totalorder %s117, %s118
      %p132 = scmp.eq.s32.totalorder %s18, 2
      %p133 = por %p131, %p132
      %p135 = scmp.ne.s32.totalorder %s118, %s134
      %p136 = scmp.eq.s32.totalorder %s18, 0
      %p137 = por %p135, %p136
      %p138 = scmp.le.s32.totalorder 1, %s12
      %p139 = scmp.lt.s32.totalorder %s12, 4
      %p140 = pnand %p138, %p139
      %p141 = pneg %p140
      // Predicated region
      $region9: #{pallas_linear.1} parent=5 // pred_check
        _
      $region10: #{pallas_linear.1} parent=5 // pred_check_branch
        %143 = sbr.rel (%p140) target = $region12
      $region11: #{pallas_linear.1} parent=5 // pred_region
        %s144 = ssub.s32 %s12, 1
        // Predicated region
        $region13: #{pallas_linear.1} parent=11 // pred_check
          %p145 = pneg %p76
        $region14: #{pallas_linear.1} parent=11 // pred_check_branch
          %147 = sbr.rel (%p145) target = $region16
        $region15: #{pallas_linear.1} parent=11 // pred_region
          %s148 = smul.u32 4, %s21
          %p149 = scmp.lt.s32.totalorder %s148, 3
          %s150 = scalar_select %p149, %s148, 3
          %s151 = smul.addr %s150, 4
          %s152 = scalar_lea.vmem %s1, %s151
          %s153 = smul.u32 4, %s21
        $region16: #{pallas_linear.1} parent=11 // pred_fallthru
          _
        // Predicated region
        $region17: #{pallas_linear.1} parent=11 // pred_check
          %p154 = pneg %p102
        $region18: #{pallas_linear.1} parent=11 // pred_check_branch
          %156 = sbr.rel (%p154) target = $region20
        $region19: #{pallas_linear.1} parent=11 // pred_region
          %s157 = smul.u32 4, %s21
          %p158 = scmp.lt.s32.totalorder %s157, 3
          %s159 = scalar_select %p158, %s157, 3
          %s160 = scalar_lea.vmem %s2, %s159
          %s161 = smul.u32 4, %s21
        $region20: #{pallas_linear.1} parent=11 // pred_fallthru
          _
      $region12: #{pallas_linear.1} parent=5 // pred_fallthru
        _
      %p162 = scmp.lt.s32.totalorder %s12, 3
      // Predicated region
      $region21: #{pallas_linear.1} parent=5 // pred_check
        %p163 = pneg %p162
      $region22: #{pallas_linear.1} parent=5 // pred_check_branch
        %165 = sbr.rel (%p163) target = $region24
      $region23: #{pallas_linear.1} parent=5 // pred_region
        // Predicated region
        $region25: #{pallas_linear.1} parent=23 // pred_check
          %p166 = pneg %p44
        $region26: #{pallas_linear.1} parent=23 // pred_check_branch
          %168 = sbr.rel (%p166) target = $region28
        $region27: #{pallas_linear.1} parent=23 // pred_region
          %s169 = smul.u32 16, %s20
          %s170 = ssub.s32 38, %s169
          %p171 = scmp.lt.s32.totalorder %s170, 16
          %s172 = scalar_select %p171, %s170, 16
          %s173 = smul.u32 64, %s172
          %s174 = smul.u32 %s173, 2
          %p175 = scmp.lt.s32.totalorder %s169, 37
          %s176 = scalar_select %p175, %s169, 37
          %s177 = smul.addr %s176, 2
          %s178 = smul.addr %s177, 4
          %s179 = scalar_lea.vmem %s0, %s178
          %s180 = smul.u32 16, %s20
          %s181 = ssub.s32 38, %s180
          %p182 = scmp.lt.s32.totalorder %s181, 16
          %s183 = scalar_select %p182, %s181, 16
          %s184 = smul.u32 64, %s183
          %s185 = smul.u32 %s184, 2
        $region28: #{pallas_linear.1} parent=23 // pred_fallthru
          _
      $region24: #{pallas_linear.1} parent=5 // pred_fallthru
        _
      %p186 = scmp.le.s32.totalorder 1, %s12
      %p187 = scmp.lt.s32.totalorder %s12, 4
      %p188 = pnand %p186, %p187
      %p189 = pneg %p188
      // Predicated region
      $region29: #{pallas_linear.1} parent=5 // pred_check
        _
      $region30: #{pallas_linear.1} parent=5 // pred_check_branch
        %191 = sbr.rel (%p188) target = $region32
      $region31: #{pallas_linear.1} parent=5 // pred_region
        %s192 = ssub.s32 %s12, 1
        %s193 = smul.u32 16, %s22
        %s194 = ssub.s32 38, %s193
        %p195 = scmp.lt.s32.totalorder %s194, 16
        %s196 = scalar_select %p195, %s194, 16
        %s197 = smul.u32 64, %s196
        %s198 = smul.u32 %s197, 2
        %p199 = scmp.lt.s32.totalorder %s193, 37
        %s200 = scalar_select %p199, %s193, 37
        %s201 = smul.addr %s200, 2
        %s202 = smul.addr %s201, 4
        %s203 = scalar_lea.vmem %s0, %s202
        %p204 = pneg %p50
        %p205 = pneg %p47
        %s206 = smul.u32 4, %s21
        %p207 = scmp.lt.s32.totalorder %s206, 3
        %s208 = scalar_select %p207, %s206, 3
        %s209 = smul.addr %s208, 4
        %s210 = scalar_lea.vmem %s1, %s209
        %p211 = pneg %p76
        %p212 = pneg %p73
        %s213 = smul.u32 4, %s21
        %p214 = scmp.lt.s32.totalorder %s213, 3
        %s215 = scalar_select %p214, %s213, 3
        %s216 = scalar_lea.vmem %s2, %s215
        %p217 = pneg %p102
        %p218 = pneg %p99
        %p219 = pneg %p130
        %p220 = pneg %p127
        %s221 = sand.u32 %s117, 1
        %s222 = scalar_lea.sflag [#allocation3], %s221
        %s223 = sand.u32 %s117, 1
        %s224 = smul.addr %s223, 512
        %s225 = scalar_lea.vmem [#allocation2], %s224
        %s226 = smul.u32 16, %s22
        %s227 = ssub.s32 38, %s226
        %p228 = scmp.lt.s32.totalorder %s227, 16
        %s229 = scalar_select %p228, %s227, 16
        %s230 = smul.u32 64, %s229
        %s231 = smul.u32 %s230, 2
        %p232 = scmp.lt.s32.totalorder %s226, 37
        %s233 = scalar_select %p232, %s226, 37
        %s234 = smul.addr %s233, 2
        %s235 = smul.addr %s234, 4
        %s236 = scalar_lea.vmem %s0, %s235
        %s237 = smul.u32 16, %s22
        %s238 = ssub.s32 38, %s237
        %p239 = scmp.lt.s32.totalorder %s238, 16
        %s240 = scalar_select %p239, %s238, 16
        %s241 = smul.u32 64, %s240
        %s242 = smul.u32 %s241, 2
        %s243 = smul.u32 4, %s21
        %p244 = scmp.lt.s32.totalorder %s243, 3
        %s245 = scalar_select %p244, %s243, 3
        %s246 = smul.addr %s245, 4
        %s247 = scalar_lea.vmem %s1, %s246
        %s248 = smul.u32 4, %s21
        %s249 = smul.u32 4, %s21
        %p250 = scmp.lt.s32.totalorder %s249, 3
        %s251 = scalar_select %p250, %s249, 3
        %s252 = scalar_lea.vmem %s2, %s251
        %s253 = smul.u32 4, %s21
        %s254 = smul.u32 16, %s22
        %s255 = smul.u32 4, %s21
        %s256 = ssub.s32 38, %s254
        %p257 = scmp.lt.s32.totalorder %s256, 16
        %s258 = scalar_select %p257, %s256, 16
        %s259 = smul.u32 128, %s258
        %s260 = smul.u32 %s259, 4
        %v261 = vld [vmem:[%s236] sm:$0xff]
        %v262 = vld [vmem:[%s236 + $0x8] sm:$0xff]
        %v263 = vld [vmem:[%s236 + $0x10] sm:$0xff]
        %v264 = vld [vmem:[%s236 + $0x18] sm:$0xff]
        %v265 = vld [vmem:[%s236 + $0x20] sm:$0xff]
        %v266 = vld [vmem:[%s236 + $0x28] sm:$0xff]
        %v267 = vld [vmem:[%s236 + $0x30] sm:$0xff]
        %v268 = vld [vmem:[%s236 + $0x38] sm:$0xff]
        %v269 = vld [vmem:[%s236 + $0x40] sm:$0xff]
        %v270 = vld [vmem:[%s236 + $0x48] sm:$0xff]
        %v271 = vld [vmem:[%s236 + $0x50] sm:$0xff]
        %v272 = vld [vmem:[%s236 + $0x58] sm:$0xff]
        %v273 = vld [vmem:[%s236 + $0x60] sm:$0xff]
        %v274 = vld [vmem:[%s236 + $0x68] sm:$0xff]
        %v275 = vld [vmem:[%s236 + $0x70] sm:$0xff]
        %v276 = vld [vmem:[%s236 + $0x78] sm:$0xff]
        %v277 = vld [vmem:[%s247] sm:$0xff]
        %v278 = vld [vmem:[%s247 + $0x8] sm:$0xff]
        %v279 = vld [vmem:[%s247 + $0x10] sm:$0xff]
        %v280 = vld [vmem:[%s247 + $0x18] sm:$0xff]
        %v281 = vld [vmem:[%s247 + $0x20] sm:$0xff]
        %v282 = vld [vmem:[%s247 + $0x28] sm:$0xff]
        %v283 = vld [vmem:[%s247 + $0x30] sm:$0xff]
        %v284 = vld [vmem:[%s247 + $0x38] sm:$0xff]
        %v285 = vld [vmem:[%s247 + $0x40] sm:$0xff]
        %v286 = vld [vmem:[%s247 + $0x48] sm:$0xff]
        %v287 = vld [vmem:[%s247 + $0x50] sm:$0xff]
        %v288 = vld [vmem:[%s247 + $0x58] sm:$0xff]
        %v289 = vld [vmem:[%s247 + $0x60] sm:$0xff]
        %v290 = vld [vmem:[%s247 + $0x68] sm:$0xff]
        %v291 = vld [vmem:[%s247 + $0x70] sm:$0xff]
        %v292 = vld [vmem:[%s247 + $0x78] sm:$0xff]
        %v293 = vld [vmem:[%s247 + $0x80] sm:$0xff]
        %v294 = vld [vmem:[%s247 + $0x88] sm:$0xff]
        %v295 = vld [vmem:[%s247 + $0x90] sm:$0xff]
        %v296 = vld [vmem:[%s247 + $0x98] sm:$0xff]
        %v297 = vld [vmem:[%s247 + $0xa0] sm:$0xff]
        %v298 = vld [vmem:[%s247 + $0xa8] sm:$0xff]
        %v299 = vld [vmem:[%s247 + $0xb0] sm:$0xff]
        %v300 = vld [vmem:[%s247 + $0xb8] sm:$0xff]
        %v301 = vld [vmem:[%s247 + $0xc0] sm:$0xff]
        %v302 = vld [vmem:[%s247 + $0xc8] sm:$0xff]
        %v303 = vld [vmem:[%s247 + $0xd0] sm:$0xff]
        %v304 = vld [vmem:[%s247 + $0xd8] sm:$0xff]
        %v305 = vld [vmem:[%s247 + $0xe0] sm:$0xff]
        %v306 = vld [vmem:[%s247 + $0xe8] sm:$0xff]
        %v307 = vld [vmem:[%s247 + $0xf0] sm:$0xff]
        %v308 = vld [vmem:[%s247 + $0xf8] sm:$0xff]
        %v309 = vld [vmem:[%s247 + $0x100] sm:$0xff]
        %v310 = vld [vmem:[%s247 + $0x108] sm:$0xff]
        %v311 = vld [vmem:[%s247 + $0x110] sm:$0xff]
        %v312 = vld [vmem:[%s247 + $0x118] sm:$0xff]
        %v313 = vld [vmem:[%s247 + $0x120] sm:$0xff]
        %v314 = vld [vmem:[%s247 + $0x128] sm:$0xff]
        %v315 = vld [vmem:[%s247 + $0x130] sm:$0xff]
        %v316 = vld [vmem:[%s247 + $0x138] sm:$0xff]
        %v317 = vld [vmem:[%s247 + $0x140] sm:$0xff]
        %v318 = vld [vmem:[%s247 + $0x148] sm:$0xff]
        %v319 = vld [vmem:[%s247 + $0x150] sm:$0xff]
        %v320 = vld [vmem:[%s247 + $0x158] sm:$0xff]
        %v321 = vld [vmem:[%s247 + $0x160] sm:$0xff]
        %v322 = vld [vmem:[%s247 + $0x168] sm:$0xff]
        %v323 = vld [vmem:[%s247 + $0x170] sm:$0xff]
        %v324 = vld [vmem:[%s247 + $0x178] sm:$0xff]
        %v325 = vld [vmem:[%s247 + $0x180] sm:$0xff]
        %v326 = vld [vmem:[%s247 + $0x188] sm:$0xff]
        %v327 = vld [vmem:[%s247 + $0x190] sm:$0xff]
        %v328 = vld [vmem:[%s247 + $0x198] sm:$0xff]
        %v329 = vld [vmem:[%s247 + $0x1a0] sm:$0xff]
        %v330 = vld [vmem:[%s247 + $0x1a8] sm:$0xff]
        %v331 = vld [vmem:[%s247 + $0x1b0] sm:$0xff]
        %v332 = vld [vmem:[%s247 + $0x1b8] sm:$0xff]
        %v333 = vld [vmem:[%s247 + $0x1c0] sm:$0xff]
        %v334 = vld [vmem:[%s247 + $0x1c8] sm:$0xff]
        %v335 = vld [vmem:[%s247 + $0x1d0] sm:$0xff]
        %v336 = vld [vmem:[%s247 + $0x1d8] sm:$0xff]
        %v337 = vld [vmem:[%s247 + $0x1e0] sm:$0xff]
        %v338 = vld [vmem:[%s247 + $0x1e8] sm:$0xff]
        %v339 = vld [vmem:[%s247 + $0x1f0] sm:$0xff]
        %v340 = vld [vmem:[%s247 + $0x1f8] sm:$0xff]
        %v341 = vld [vmem:[%s252] sm:$0xf]
        %v343 = vlaneseq
        %v344 = vshrl.u32 %v343, 7
        %v345 = vsub.s32 0, %v344
        %v346 = vrot.slane %v341, %v345
        %v347 = vlaneseq
        %v348 = vshrl.u32 %v347, 7
        %v349 = vsub.s32 1, %v348
        %v350 = vrot.slane %v341, %v349
        %v351 = vlaneseq
        %v352 = vshrl.u32 %v351, 7
        %v353 = vsub.s32 2, %v352
        %v354 = vrot.slane %v341, %v353
        %v355 = vlaneseq
        %v356 = vshrl.u32 %v355, 7
        %v357 = vsub.s32 3, %v356
        %v358 = vrot.slane %v341, %v357
        %v379 = vunpack.c.l.b16 %v261
        %v380 = vunpack.c.h.b16 %v261
        %v381 = vunpack.c.l.b16 %v262
        %v382 = vunpack.c.h.b16 %v262
        %v383 = vunpack.c.l.b16 %v263
        %v384 = vunpack.c.h.b16 %v263
        %v385 = vunpack.c.l.b16 %v264
        %v386 = vunpack.c.h.b16 %v264
        %v387 = vunpack.c.l.b16 %v265
        %v388 = vunpack.c.h.b16 %v265
        %v389 = vunpack.c.l.b16 %v266
        %v390 = vunpack.c.h.b16 %v266
        %v391 = vunpack.c.l.b16 %v267
        %v392 = vunpack.c.h.b16 %v267
        %v393 = vunpack.c.l.b16 %v268
        %v394 = vunpack.c.h.b16 %v268
        %v395 = vunpack.c.l.b16 %v269
        %v396 = vunpack.c.h.b16 %v269
        %v397 = vunpack.c.l.b16 %v270
        %v398 = vunpack.c.h.b16 %v270
        %v399 = vunpack.c.l.b16 %v271
        %v400 = vunpack.c.h.b16 %v271
        %v401 = vunpack.c.l.b16 %v272
        %v402 = vunpack.c.h.b16 %v272
        %v403 = vunpack.c.l.b16 %v273
        %v404 = vunpack.c.h.b16 %v273
        %v405 = vunpack.c.l.b16 %v274
        %v406 = vunpack.c.h.b16 %v274
        %v407 = vunpack.c.l.b16 %v275
        %v408 = vunpack.c.h.b16 %v275
        %v409 = vunpack.c.l.b16 %v276
        %v410 = vunpack.c.h.b16 %v276
        %v411 = vpack.c.b16 %v381, %v379
        %v412 = vpack.c.b16 %v382, %v380
        %v413 = vpack.c.b16 %v385, %v383
        %v414 = vpack.c.b16 %v386, %v384
        %v415 = vpack.c.b16 %v389, %v387
        %v416 = vpack.c.b16 %v390, %v388
        %v417 = vpack.c.b16 %v393, %v391
        %v418 = vpack.c.b16 %v394, %v392
        %v419 = vpack.c.b16 %v397, %v395
        %v420 = vpack.c.b16 %v398, %v396
        %v421 = vpack.c.b16 %v401, %v399
        %v422 = vpack.c.b16 %v402, %v400
        %v423 = vpack.c.b16 %v405, %v403
        %v424 = vpack.c.b16 %v406, %v404
        %v425 = vpack.c.b16 %v409, %v407
        %v426 = vpack.c.b16 %v410, %v408
        %v507 = vunpack.c.l.b16 %v277
        %v508 = vunpack.c.h.b16 %v277
        %v509 = vunpack.c.l.b16 %v278
        %v510 = vunpack.c.h.b16 %v278
        %v511 = vunpack.c.l.b16 %v279
        %v512 = vunpack.c.h.b16 %v279
        %v513 = vunpack.c.l.b16 %v280
        %v514 = vunpack.c.h.b16 %v280
        %v515 = vunpack.c.l.b16 %v281
        %v516 = vunpack.c.h.b16 %v281
        %v517 = vunpack.c.l.b16 %v282
        %v518 = vunpack.c.h.b16 %v282
        %v519 = vunpack.c.l.b16 %v283
        %v520 = vunpack.c.h.b16 %v283
        %v521 = vunpack.c.l.b16 %v284
        %v522 = vunpack.c.h.b16 %v284
        %v523 = vunpack.c.l.b16 %v285
        %v524 = vunpack.c.h.b16 %v285
        %v525 = vunpack.c.l.b16 %v286
        %v526 = vunpack.c.h.b16 %v286
        %v527 = vunpack.c.l.b16 %v287
        %v528 = vunpack.c.h.b16 %v287
        %v529 = vunpack.c.l.b16 %v288
        %v530 = vunpack.c.h.b16 %v288
        %v531 = vunpack.c.l.b16 %v289
        %v532 = vunpack.c.h.b16 %v289
        %v533 = vunpack.c.l.b16 %v290
        %v534 = vunpack.c.h.b16 %v290
        %v535 = vunpack.c.l.b16 %v291
        %v536 = vunpack.c.h.b16 %v291
        %v537 = vunpack.c.l.b16 %v292
        %v538 = vunpack.c.h.b16 %v292
        %v539 = vunpack.c.l.b16 %v293
        %v540 = vunpack.c.h.b16 %v293
        %v541 = vunpack.c.l.b16 %v294
        %v542 = vunpack.c.h.b16 %v294
        %v543 = vunpack.c.l.b16 %v295
        %v544 = vunpack.c.h.b16 %v295
        %v545 = vunpack.c.l.b16 %v296
        %v546 = vunpack.c.h.b16 %v296
        %v547 = vunpack.c.l.b16 %v297
        %v548 = vunpack.c.h.b16 %v297
        %v549 = vunpack.c.l.b16 %v298
        %v550 = vunpack.c.h.b16 %v298
        %v551 = vunpack.c.l.b16 %v299
        %v552 = vunpack.c.h.b16 %v299
        %v553 = vunpack.c.l.b16 %v300
        %v554 = vunpack.c.h.b16 %v300
        %v555 = vunpack.c.l.b16 %v301
        %v556 = vunpack.c.h.b16 %v301
        %v557 = vunpack.c.l.b16 %v302
        %v558 = vunpack.c.h.b16 %v302
        %v559 = vunpack.c.l.b16 %v303
        %v560 = vunpack.c.h.b16 %v303
        %v561 = vunpack.c.l.b16 %v304
        %v562 = vunpack.c.h.b16 %v304
        %v563 = vunpack.c.l.b16 %v305
        %v564 = vunpack.c.h.b16 %v305
        %v565 = vunpack.c.l.b16 %v306
        %v566 = vunpack.c.h.b16 %v306
        %v567 = vunpack.c.l.b16 %v307
        %v568 = vunpack.c.h.b16 %v307
        %v569 = vunpack.c.l.b16 %v308
        %v570 = vunpack.c.h.b16 %v308
        %v571 = vunpack.c.l.b16 %v309
        %v572 = vunpack.c.h.b16 %v309
        %v573 = vunpack.c.l.b16 %v310
        %v574 = vunpack.c.h.b16 %v310
        %v575 = vunpack.c.l.b16 %v311
        %v576 = vunpack.c.h.b16 %v311
        %v577 = vunpack.c.l.b16 %v312
        %v578 = vunpack.c.h.b16 %v312
        %v579 = vunpack.c.l.b16 %v313
        %v580 = vunpack.c.h.b16 %v313
        %v581 = vunpack.c.l.b16 %v314
        %v582 = vunpack.c.h.b16 %v314
        %v583 = vunpack.c.l.b16 %v315
        %v584 = vunpack.c.h.b16 %v315
        %v585 = vunpack.c.l.b16 %v316
        %v586 = vunpack.c.h.b16 %v316
        %v587 = vunpack.c.l.b16 %v317
        %v588 = vunpack.c.h.b16 %v317
        %v589 = vunpack.c.l.b16 %v318
        %v590 = vunpack.c.h.b16 %v318
        %v591 = vunpack.c.l.b16 %v319
        %v592 = vunpack.c.h.b16 %v319
        %v593 = vunpack.c.l.b16 %v320
        %v594 = vunpack.c.h.b16 %v320
        %v595 = vunpack.c.l.b16 %v321
        %v596 = vunpack.c.h.b16 %v321
        %v597 = vunpack.c.l.b16 %v322
        %v598 = vunpack.c.h.b16 %v322
        %v599 = vunpack.c.l.b16 %v323
        %v600 = vunpack.c.h.b16 %v323
        %v601 = vunpack.c.l.b16 %v324
        %v602 = vunpack.c.h.b16 %v324
        %v603 = vunpack.c.l.b16 %v325
        %v604 = vunpack.c.h.b16 %v325
        %v605 = vunpack.c.l.b16 %v326
        %v606 = vunpack.c.h.b16 %v326
        %v607 = vunpack.c.l.b16 %v327
        %v608 = vunpack.c.h.b16 %v327
        %v609 = vunpack.c.l.b16 %v328
        %v610 = vunpack.c.h.b16 %v328
        %v611 = vunpack.c.l.b16 %v329
        %v612 = vunpack.c.h.b16 %v329
        %v613 = vunpack.c.l.b16 %v330
        %v614 = vunpack.c.h.b16 %v330
        %v615 = vunpack.c.l.b16 %v331
        %v616 = vunpack.c.h.b16 %v331
        %v617 = vunpack.c.l.b16 %v332
        %v618 = vunpack.c.h.b16 %v332
        %v619 = vunpack.c.l.b16 %v333
        %v620 = vunpack.c.h.b16 %v333
        %v621 = vunpack.c.l.b16 %v334
        %v622 = vunpack.c.h.b16 %v334
        %v623 = vunpack.c.l.b16 %v335
        %v624 = vunpack.c.h.b16 %v335
        %v625 = vunpack.c.l.b16 %v336
        %v626 = vunpack.c.h.b16 %v336
        %v627 = vunpack.c.l.b16 %v337
        %v628 = vunpack.c.h.b16 %v337
        %v629 = vunpack.c.l.b16 %v338
        %v630 = vunpack.c.h.b16 %v338
        %v631 = vunpack.c.l.b16 %v339
        %v632 = vunpack.c.h.b16 %v339
        %v633 = vunpack.c.l.b16 %v340
        %v634 = vunpack.c.h.b16 %v340
        %v635 = vpack.c.b16 %v511, %v507
        %v636 = vpack.c.b16 %v512, %v508
        %v637 = vpack.c.b16 %v513, %v509
        %v638 = vpack.c.b16 %v514, %v510
        %v639 = vpack.c.b16 %v519, %v515
        %v640 = vpack.c.b16 %v520, %v516
        %v641 = vpack.c.b16 %v521, %v517
        %v642 = vpack.c.b16 %v522, %v518
        %v643 = vpack.c.b16 %v527, %v523
        %v644 = vpack.c.b16 %v528, %v524
        %v645 = vpack.c.b16 %v529, %v525
        %v646 = vpack.c.b16 %v530, %v526
        %v647 = vpack.c.b16 %v535, %v531
        %v648 = vpack.c.b16 %v536, %v532
        %v649 = vpack.c.b16 %v537, %v533
        %v650 = vpack.c.b16 %v538, %v534
        %v651 = vpack.c.b16 %v543, %v539
        %v652 = vpack.c.b16 %v544, %v540
        %v653 = vpack.c.b16 %v545, %v541
        %v654 = vpack.c.b16 %v546, %v542
        %v655 = vpack.c.b16 %v551, %v547
        %v656 = vpack.c.b16 %v552, %v548
        %v657 = vpack.c.b16 %v553, %v549
        %v658 = vpack.c.b16 %v554, %v550
        %v659 = vpack.c.b16 %v559, %v555
        %v660 = vpack.c.b16 %v560, %v556
        %v661 = vpack.c.b16 %v561, %v557
        %v662 = vpack.c.b16 %v562, %v558
        %v663 = vpack.c.b16 %v567, %v563
        %v664 = vpack.c.b16 %v568, %v564
        %v665 = vpack.c.b16 %v569, %v565
        %v666 = vpack.c.b16 %v570, %v566
        %v667 = vpack.c.b16 %v575, %v571
        %v668 = vpack.c.b16 %v576, %v572
        %v669 = vpack.c.b16 %v577, %v573
        %v670 = vpack.c.b16 %v578, %v574
        %v671 = vpack.c.b16 %v583, %v579
        %v672 = vpack.c.b16 %v584, %v580
        %v673 = vpack.c.b16 %v585, %v581
        %v674 = vpack.c.b16 %v586, %v582
        %v675 = vpack.c.b16 %v591, %v587
        %v676 = vpack.c.b16 %v592, %v588
        %v677 = vpack.c.b16 %v593, %v589
        %v678 = vpack.c.b16 %v594, %v590
        %v679 = vpack.c.b16 %v599, %v595
        %v680 = vpack.c.b16 %v600, %v596
        %v681 = vpack.c.b16 %v601, %v597
        %v682 = vpack.c.b16 %v602, %v598
        %v683 = vpack.c.b16 %v607, %v603
        %v684 = vpack.c.b16 %v608, %v604
        %v685 = vpack.c.b16 %v609, %v605
        %v686 = vpack.c.b16 %v610, %v606
        %v687 = vpack.c.b16 %v615, %v611
        %v688 = vpack.c.b16 %v616, %v612
        %v689 = vpack.c.b16 %v617, %v613
        %v690 = vpack.c.b16 %v618, %v614
        %v691 = vpack.c.b16 %v623, %v619
        %v692 = vpack.c.b16 %v624, %v620
        %v693 = vpack.c.b16 %v625, %v621
        %v694 = vpack.c.b16 %v626, %v622
        %v695 = vpack.c.b16 %v631, %v627
        %v696 = vpack.c.b16 %v632, %v628
        %v697 = vpack.c.b16 %v633, %v629
        %v698 = vpack.c.b16 %v634, %v630
        %763 = vmatprep.subr.bf16.mxu0 %v664
        %764 = vmatpush1.bf16.msra.mxu0 %v663
        %765 = vmatprep.subr.bf16.mxu0 %v660
        %766 = vmatpush1.bf16.msra.mxu0 %v659
        %767 = vmatprep.subr.bf16.mxu0 %v656
        %768 = vmatpush1.bf16.msra.mxu0 %v655
        %769 = vmatprep.subr.bf16.mxu0 %v652
        %770 = vmatpush1.bf16.msra.mxu0 %v651
        %771 = vmatprep.subr.bf16.mxu0 %v648
        %772 = vmatpush1.bf16.msra.mxu0 %v647
        %773 = vmatprep.subr.bf16.mxu0 %v644
        %774 = vmatpush1.bf16.msra.mxu0 %v643
        %775 = vmatprep.subr.bf16.mxu0 %v640
        %776 = vmatpush1.bf16.msra.mxu0 %v639
        %777 = vmatprep.subr.bf16.mxu0 %v636
        %778 = vmatpush1.bf16.msra.mxu0 %v635
        %779 = vmatprep.subr.bf16.mxu0 %v696
        %780 = vmatpush2.bf16.msra.mxu0 %v695
        %781 = vmatprep.subr.bf16.mxu0 %v692
        %782 = vmatpush2.bf16.msra.mxu0 %v691
        %783 = vmatprep.subr.bf16.mxu0 %v688
        %784 = vmatpush2.bf16.msra.mxu0 %v687
        %785 = vmatprep.subr.bf16.mxu0 %v684
        %786 = vmatpush2.bf16.msra.mxu0 %v683
        %787 = vmatprep.subr.bf16.mxu0 %v680
        %788 = vmatpush2.bf16.msra.mxu0 %v679
        %789 = vmatprep.subr.bf16.mxu0 %v676
        %790 = vmatpush2.bf16.msra.mxu0 %v675
        %791 = vmatprep.subr.bf16.mxu0 %v672
        %792 = vmatpush2.bf16.msra.mxu0 %v671
        %793 = vmatprep.subr.bf16.mxu0 %v668
        %794 = vmatpush2.bf16.msra.mxu0 %v667
        %795 = vmatprep.mubr.bf16.mxu0 %v412
        %796 = vmatmul.mubr.bf16.gmra.mxu0 %v411
        %v797 = vpop.f32.mrf.mxu0
        %v798 = vadd.f32 %v346, %v797
        %v799 = vpop.f32.mrf.mxu0
        %v800 = vadd.f32 %v350, %v799
        %v801 = vpop.f32.mrf.mxu0
        %v802 = vadd.f32 %v346, %v801
        %v803 = vpop.f32.mrf.mxu0
        %v804 = vadd.f32 %v350, %v803
        %805 = vmatprep.mubr.bf16.mxu0 %v414
        %806 = vmatmul.mubr.bf16.gmra.mxu0 %v413
        %v807 = vpop.f32.mrf.mxu0
        %v808 = vadd.f32 %v346, %v807
        %v809 = vpop.f32.mrf.mxu0
        %v810 = vadd.f32 %v350, %v809
        %v811 = vpop.f32.mrf.mxu0
        %v812 = vadd.f32 %v346, %v811
        %v813 = vpop.f32.mrf.mxu0
        %v814 = vadd.f32 %v350, %v813
        %815 = vmatprep.mubr.bf16.mxu0 %v416
        %816 = vmatmul.mubr.bf16.gmra.mxu0 %v415
        %v817 = vpop.f32.mrf.mxu0
        %v818 = vadd.f32 %v346, %v817
        %v819 = vpop.f32.mrf.mxu0
        %v820 = vadd.f32 %v350, %v819
        %v821 = vpop.f32.mrf.mxu0
        %v822 = vadd.f32 %v346, %v821
        %v823 = vpop.f32.mrf.mxu0
        %v824 = vadd.f32 %v350, %v823
        %825 = vmatprep.mubr.bf16.mxu0 %v418
        %826 = vmatmul.mubr.bf16.gmra.mxu0 %v417
        %v827 = vpop.f32.mrf.mxu0
        %v828 = vadd.f32 %v346, %v827
        %v829 = vpop.f32.mrf.mxu0
        %v830 = vadd.f32 %v350, %v829
        %v831 = vpop.f32.mrf.mxu0
        %v832 = vadd.f32 %v346, %v831
        %v833 = vpop.f32.mrf.mxu0
        %v834 = vadd.f32 %v350, %v833
        %835 = vmatprep.mubr.bf16.mxu0 %v420
        %836 = vmatmul.mubr.bf16.gmra.mxu0 %v419
        %v837 = vpop.f32.mrf.mxu0
        %v838 = vadd.f32 %v346, %v837
        %v839 = vpop.f32.mrf.mxu0
        %v840 = vadd.f32 %v350, %v839
        %v841 = vpop.f32.mrf.mxu0
        %v842 = vadd.f32 %v346, %v841
        %v843 = vpop.f32.mrf.mxu0
        %v844 = vadd.f32 %v350, %v843
        %845 = vmatprep.mubr.bf16.mxu0 %v422
        %846 = vmatmul.mubr.bf16.gmra.mxu0 %v421
        %v847 = vpop.f32.mrf.mxu0
        %v848 = vadd.f32 %v346, %v847
        %v849 = vpop.f32.mrf.mxu0
        %v850 = vadd.f32 %v350, %v849
        %v851 = vpop.f32.mrf.mxu0
        %v852 = vadd.f32 %v346, %v851
        %v853 = vpop.f32.mrf.mxu0
        %v854 = vadd.f32 %v350, %v853
        %855 = vmatprep.mubr.bf16.mxu0 %v424
        %856 = vmatmul.mubr.bf16.gmra.mxu0 %v423
        %v857 = vpop.f32.mrf.mxu0
        %v858 = vadd.f32 %v346, %v857
        %v859 = vpop.f32.mrf.mxu0
        %v860 = vadd.f32 %v350, %v859
        %v861 = vpop.f32.mrf.mxu0
        %v862 = vadd.f32 %v346, %v861
        %v863 = vpop.f32.mrf.mxu0
        %v864 = vadd.f32 %v350, %v863
        %865 = vmatprep.mubr.bf16.mxu0 %v426
        %866 = vmatmul.mubr.bf16.gmra.mxu0 %v425
        %v867 = vpop.f32.mrf.mxu0
        %v868 = vadd.f32 %v346, %v867
        %v869 = vpop.f32.mrf.mxu0
        %v870 = vadd.f32 %v350, %v869
        %v871 = vpop.f32.mrf.mxu0
        %v872 = vadd.f32 %v346, %v871
        %v873 = vpop.f32.mrf.mxu0
        %v874 = vadd.f32 %v350, %v873
        %875 = vdwg.mxu0
        %876 = vmatprep.subr.bf16.mxu0 %v666
        %877 = vmatpush1.bf16.msra.mxu0 %v665
        %878 = vmatprep.subr.bf16.mxu0 %v662
        %879 = vmatpush1.bf16.msra.mxu0 %v661
        %880 = vmatprep.subr.bf16.mxu0 %v658
        %881 = vmatpush1.bf16.msra.mxu0 %v657
        %882 = vmatprep.subr.bf16.mxu0 %v654
        %883 = vmatpush1.bf16.msra.mxu0 %v653
        %884 = vmatprep.subr.bf16.mxu0 %v650
        %885 = vmatpush1.bf16.msra.mxu0 %v649
        %886 = vmatprep.subr.bf16.mxu0 %v646
        %887 = vmatpush1.bf16.msra.mxu0 %v645
        %888 = vmatprep.subr.bf16.mxu0 %v642
        %889 = vmatpush1.bf16.msra.mxu0 %v641
        %890 = vmatprep.subr.bf16.mxu0 %v638
        %891 = vmatpush1.bf16.msra.mxu0 %v637
        %892 = vmatprep.subr.bf16.mxu0 %v698
        %893 = vmatpush2.bf16.msra.mxu0 %v697
        %894 = vmatprep.subr.bf16.mxu0 %v694
        %895 = vmatpush2.bf16.msra.mxu0 %v693
        %896 = vmatprep.subr.bf16.mxu0 %v690
        %897 = vmatpush2.bf16.msra.mxu0 %v689
        %898 = vmatprep.subr.bf16.mxu0 %v686
        %899 = vmatpush2.bf16.msra.mxu0 %v685
        %900 = vmatprep.subr.bf16.mxu0 %v682
        %901 = vmatpush2.bf16.msra.mxu0 %v681
        %902 = vmatprep.subr.bf16.mxu0 %v678
        %903 = vmatpush2.bf16.msra.mxu0 %v677
        %904 = vmatprep.subr.bf16.mxu0 %v674
        %905 = vmatpush2.bf16.msra.mxu0 %v673
        %906 = vmatprep.subr.bf16.mxu0 %v670
        %907 = vmatpush2.bf16.msra.mxu0 %v669
        %908 = vmatprep.mubr.bf16.mxu0 %v412
        %909 = vmatmul.mubr.bf16.gmra.mxu0 %v411
        %v910 = vpop.f32.mrf.mxu0
        %v911 = vadd.f32 %v354, %v910
        %v912 = vpop.f32.mrf.mxu0
        %v913 = vadd.f32 %v358, %v912
        %v914 = vpop.f32.mrf.mxu0
        %v915 = vadd.f32 %v354, %v914
        %v916 = vpop.f32.mrf.mxu0
        %v917 = vadd.f32 %v358, %v916
        %918 = vmatprep.mubr.bf16.mxu0 %v414
        %919 = vmatmul.mubr.bf16.gmra.mxu0 %v413
        %v920 = vpop.f32.mrf.mxu0
        %v921 = vadd.f32 %v354, %v920
        %v922 = vpop.f32.mrf.mxu0
        %v923 = vadd.f32 %v358, %v922
        %v924 = vpop.f32.mrf.mxu0
        %v925 = vadd.f32 %v354, %v924
        %v926 = vpop.f32.mrf.mxu0
        %v927 = vadd.f32 %v358, %v926
        %928 = vmatprep.mubr.bf16.mxu0 %v416
        %929 = vmatmul.mubr.bf16.gmra.mxu0 %v415
        %v930 = vpop.f32.mrf.mxu0
        %v931 = vadd.f32 %v354, %v930
        %v932 = vpop.f32.mrf.mxu0
        %v933 = vadd.f32 %v358, %v932
        %v934 = vpop.f32.mrf.mxu0
        %v935 = vadd.f32 %v354, %v934
        %v936 = vpop.f32.mrf.mxu0
        %v937 = vadd.f32 %v358, %v936
        %938 = vmatprep.mubr.bf16.mxu0 %v418
        %939 = vmatmul.mubr.bf16.gmra.mxu0 %v417
        %v940 = vpop.f32.mrf.mxu0
        %v941 = vadd.f32 %v354, %v940
        %v942 = vpop.f32.mrf.mxu0
        %v943 = vadd.f32 %v358, %v942
        %v944 = vpop.f32.mrf.mxu0
        %v945 = vadd.f32 %v354, %v944
        %v946 = vpop.f32.mrf.mxu0
        %v947 = vadd.f32 %v358, %v946
        %948 = vmatprep.mubr.bf16.mxu0 %v420
        %949 = vmatmul.mubr.bf16.gmra.mxu0 %v419
        %v950 = vpop.f32.mrf.mxu0
        %v951 = vadd.f32 %v354, %v950
        %v952 = vpop.f32.mrf.mxu0
        %v953 = vadd.f32 %v358, %v952
        %v954 = vpop.f32.mrf.mxu0
        %v955 = vadd.f32 %v354, %v954
        %v956 = vpop.f32.mrf.mxu0
        %v957 = vadd.f32 %v358, %v956
        %958 = vmatprep.mubr.bf16.mxu0 %v422
        %959 = vmatmul.mubr.bf16.gmra.mxu0 %v421
        %v960 = vpop.f32.mrf.mxu0
        %v961 = vadd.f32 %v354, %v960
        %v962 = vpop.f32.mrf.mxu0
        %v963 = vadd.f32 %v358, %v962
        %v964 = vpop.f32.mrf.mxu0
        %v965 = vadd.f32 %v354, %v964
        %v966 = vpop.f32.mrf.mxu0
        %v967 = vadd.f32 %v358, %v966
        %968 = vmatprep.mubr.bf16.mxu0 %v424
        %969 = vmatmul.mubr.bf16.gmra.mxu0 %v423
        %v970 = vpop.f32.mrf.mxu0
        %v971 = vadd.f32 %v354, %v970
        %v972 = vpop.f32.mrf.mxu0
        %v973 = vadd.f32 %v358, %v972
        %v974 = vpop.f32.mrf.mxu0
        %v975 = vadd.f32 %v354, %v974
        %v976 = vpop.f32.mrf.mxu0
        %v977 = vadd.f32 %v358, %v976
        %978 = vmatprep.mubr.bf16.mxu0 %v426
        %979 = vmatmul.mubr.bf16.gmra.mxu0 %v425
        %v980 = vpop.f32.mrf.mxu0
        %v981 = vadd.f32 %v354, %v980
        %v982 = vpop.f32.mrf.mxu0
        %v983 = vadd.f32 %v358, %v982
        %v984 = vpop.f32.mrf.mxu0
        %v985 = vadd.f32 %v354, %v984
        %v986 = vpop.f32.mrf.mxu0
        %v987 = vadd.f32 %v358, %v986
        %988 = vdwg.mxu0
        %989 = vst [vmem:[%s225] sm:$0xff] %v798
        %990 = vst [vmem:[%s225 + $0x8] sm:$0xff] %v800
        %991 = vst [vmem:[%s225 + $0x10] sm:$0xff] %v911
        %992 = vst [vmem:[%s225 + $0x18] sm:$0xff] %v913
        %993 = vst [vmem:[%s225 + $0x20] sm:$0xff] %v802
        %994 = vst [vmem:[%s225 + $0x28] sm:$0xff] %v804
        %995 = vst [vmem:[%s225 + $0x30] sm:$0xff] %v915
        %996 = vst [vmem:[%s225 + $0x38] sm:$0xff] %v917
        %997 = vst [vmem:[%s225 + $0x40] sm:$0xff] %v808
        %998 = vst [vmem:[%s225 + $0x48] sm:$0xff] %v810
        %999 = vst [vmem:[%s225 + $0x50] sm:$0xff] %v921
        %1000 = vst [vmem:[%s225 + $0x58] sm:$0xff] %v923
        %1001 = vst [vmem:[%s225 + $0x60] sm:$0xff] %v812
        %1002 = vst [vmem:[%s225 + $0x68] sm:$0xff] %v814
        %1003 = vst [vmem:[%s225 + $0x70] sm:$0xff] %v925
        %1004 = vst [vmem:[%s225 + $0x78] sm:$0xff] %v927
        %1005 = vst [vmem:[%s225 + $0x80] sm:$0xff] %v818
        %1006 = vst [vmem:[%s225 + $0x88] sm:$0xff] %v820
        %1007 = vst [vmem:[%s225 + $0x90] sm:$0xff] %v931
        %1008 = vst [vmem:[%s225 + $0x98] sm:$0xff] %v933
        %1009 = vst [vmem:[%s225 + $0xa0] sm:$0xff] %v822
        %1010 = vst [vmem:[%s225 + $0xa8] sm:$0xff] %v824
        %1011 = vst [vmem:[%s225 + $0xb0] sm:$0xff] %v935
        %1012 = vst [vmem:[%s225 + $0xb8] sm:$0xff] %v937
        %1013 = vst [vmem:[%s225 + $0xc0] sm:$0xff] %v828
        %1014 = vst [vmem:[%s225 + $0xc8] sm:$0xff] %v830
        %1015 = vst [vmem:[%s225 + $0xd0] sm:$0xff] %v941
        %1016 = vst [vmem:[%s225 + $0xd8] sm:$0xff] %v943
        %1017 = vst [vmem:[%s225 + $0xe0] sm:$0xff] %v832
        %1018 = vst [vmem:[%s225 + $0xe8] sm:$0xff] %v834
        %1019 = vst [vmem:[%s225 + $0xf0] sm:$0xff] %v945
        %1020 = vst [vmem:[%s225 + $0xf8] sm:$0xff] %v947
        %1021 = vst [vmem:[%s225 + $0x100] sm:$0xff] %v838
        %1022 = vst [vmem:[%s225 + $0x108] sm:$0xff] %v840
        %1023 = vst [vmem:[%s225 + $0x110] sm:$0xff] %v951
        %1024 = vst [vmem:[%s225 + $0x118] sm:$0xff] %v953
        %1025 = vst [vmem:[%s225 + $0x120] sm:$0xff] %v842
        %1026 = vst [vmem:[%s225 + $0x128] sm:$0xff] %v844
        %1027 = vst [vmem:[%s225 + $0x130] sm:$0xff] %v955
        %1028 = vst [vmem:[%s225 + $0x138] sm:$0xff] %v957
        %1029 = vst [vmem:[%s225 + $0x140] sm:$0xff] %v848
        %1030 = vst [vmem:[%s225 + $0x148] sm:$0xff] %v850
        %1031 = vst [vmem:[%s225 + $0x150] sm:$0xff] %v961
        %1032 = vst [vmem:[%s225 + $0x158] sm:$0xff] %v963
        %1033 = vst [vmem:[%s225 + $0x160] sm:$0xff] %v852
        %1034 = vst [vmem:[%s225 + $0x168] sm:$0xff] %v854
        %1035 = vst [vmem:[%s225 + $0x170] sm:$0xff] %v965
        %1036 = vst [vmem:[%s225 + $0x178] sm:$0xff] %v967
        %1037 = vst [vmem:[%s225 + $0x180] sm:$0xff] %v858
        %1038 = vst [vmem:[%s225 + $0x188] sm:$0xff] %v860
        %1039 = vst [vmem:[%s225 + $0x190] sm:$0xff] %v971
        %1040 = vst [vmem:[%s225 + $0x198] sm:$0xff] %v973
        %1041 = vst [vmem:[%s225 + $0x1a0] sm:$0xff] %v862
        %1042 = vst [vmem:[%s225 + $0x1a8] sm:$0xff] %v864
        %1043 = vst [vmem:[%s225 + $0x1b0] sm:$0xff] %v975
        %1044 = vst [vmem:[%s225 + $0x1b8] sm:$0xff] %v977
        %1045 = vst [vmem:[%s225 + $0x1c0] sm:$0xff] %v868
        %1046 = vst [vmem:[%s225 + $0x1c8] sm:$0xff] %v870
        %1047 = vst [vmem:[%s225 + $0x1d0] sm:$0xff] %v981
        %1048 = vst [vmem:[%s225 + $0x1d8] sm:$0xff] %v983
        %1049 = vst [vmem:[%s225 + $0x1e0] sm:$0xff] %v872
        %1050 = vst [vmem:[%s225 + $0x1e8] sm:$0xff] %v874
        %1051 = vst [vmem:[%s225 + $0x1f0] sm:$0xff] %v985
        %1052 = vst [vmem:[%s225 + $0x1f8] sm:$0xff] %v987
        %s1053 = sand.u32 %s117, 1
        %s1054 = scalar_lea.sflag [#allocation3], %s1053
        %s1055 = sand.u32 %s117, 1
        %s1056 = smul.addr %s1055, 512
        %s1057 = scalar_lea.vmem [#allocation2], %s1056
        // Predicated region
        $region33: #{pallas_linear.1} parent=31 // pred_check
          %p1058 = pneg %p127
        $region34: #{pallas_linear.1} parent=31 // pred_check_branch
          %1060 = sbr.rel (%p1058) target = $region36
        $region35: #{pallas_linear.1} parent=31 // pred_region
          %s1061 = smul.u32 16, %s22
          %s1062 = smul.u32 4, %s21
          %s1063 = ssub.s32 38, %s1061
          %p1064 = scmp.lt.s32.totalorder %s1063, 16
          %s1065 = scalar_select %p1064, %s1063, 16
          %s1066 = smul.u32 128, %s1065
          %s1067 = smul.u32 %s1066, 4
          %s1069 = ssub.s32 8192, %s1067
          %1070 = vsyncadd %s1054, %s1069
          %p1071 = scmp.ne.s32.totalorder 0, %s1067
          %s1072 = smul.addr %s1061, 4
          %s1073 = sadd.s32 %s1062, %s1072
          %s1074 = smul.addr %s1073, 128
          %s1075 = scalar_lea.hbm %s3, %s1074
          %s1076 = smul.u32 32, %s1065
          %s1077 = sshll.u32 %s1057, 4
          %s1078 = int_to_ptr.vmem [resolvable:$true] %s1077
          %s1079 = sshll.u32 %s1076, 4
          %1083 = dma.vmem_to_hbm [thread:$0]  (%p1071), %s1078, %s1079, %s1075, %s1054, 512, 512, 32
        $region36: #{pallas_linear.1} parent=31 // pred_fallthru
          _
      $region32: #{pallas_linear.1} parent=5 // pred_fallthru
        _
      %p1084 = scmp.le.s32.totalorder 2, %s12
      // Predicated region
      $region37: #{pallas_linear.1} parent=5 // pred_check
        %p1085 = pneg %p1084
      $region38: #{pallas_linear.1} parent=5 // pred_check_branch
        %1087 = sbr.rel (%p1085) target = $region40
      $region39: #{pallas_linear.1} parent=5 // pred_region
        %s1088 = ssub.s32 %s12, 2
        // Predicated region
        $region41: #{pallas_linear.1} parent=39 // pred_check
          %p1089 = pneg %p133
        $region42: #{pallas_linear.1} parent=39 // pred_check_branch
          %1091 = sbr.rel (%p1089) target = $region44
        $region43: #{pallas_linear.1} parent=39 // pred_region
          %s1092 = sand.u32 %s118, 1
          %s1093 = scalar_lea.sflag [#allocation3], %s1092
          %s1094 = sand.u32 %s118, 1
          %s1095 = smul.addr %s1094, 512
          %s1096 = scalar_lea.vmem [#allocation2], %s1095
          %1097 = dma.done %s1093, 8192
        $region44: #{pallas_linear.1} parent=39 // pred_fallthru
          _
      $region40: #{pallas_linear.1} parent=5 // pred_fallthru
        _
    $region6: #{pallas_linear.1} parent=1 // loop_footer
      %s16 = sadd.s32 1, %s12
    $region7: #{pallas_linear.1} parent=1 // loop_footer_branch
      %11 = sbr.rel target = $region3
    $region8: #{pallas_linear.1} parent=1 // loop_exit
      _
    %1098 = vsyncpa [#allocation3], 1
    %s1099 = scalar_lea.sflag [#allocation3], 1
    %1100 = vsyncpa %s1099, 1

</llo_original>
